<compile_context>
chip_gen: v6e
topology: v6e:2x2x1
jax: 0.10.0
libtpu: 0.0.40
codegen_flags: <defaults>
</compile_context>

<pallas_src>
import math

import jax
import jax.numpy as jnp
from jax import lax
from jax.experimental import pallas as pl
from jax.experimental.pallas import tpu as pltpu


_INV_SQRT2 = 1.0 / math.sqrt(2.0)


def _adapter_kernel(x_ref, w1_ref, b1_ref, w2_ref, b2_ref, o_ref):
    # x_ref : (tr, p*D)  packed-token tile (row-major view of x, lane dense)
    # w1_ref: (p*D, p*H) block-diagonal fc1 weight      -- VMEM resident
    # b1_ref: (1,  p*H)  f32
    # w2_ref: (p*H, p*D) block-diagonal fc2 weight      -- VMEM resident
    # b2_ref: (1,  p*D)  f32
    # o_ref : (tr, p*D)

    # fc1: [tr, p*D] @ [p*D, p*H] -> [tr, p*H]          (MXU, f32 accumulate)
    h = jnp.dot(x_ref[...], w1_ref[...], preferred_element_type=jnp.float32)
    h = h + b1_ref[...]

    # Exact (erf-based) GELU in f32 -- matches torch.nn.GELU default numerics.
    h = 0.5 * h * (1.0 + lax.erf(h * _INV_SQRT2))

    # fc2: [tr, p*H] @ [p*H, p*D] -> [tr, p*D]          (MXU, f32 accumulate)
    y = jnp.dot(h.astype(w2_ref.dtype), w2_ref[...],
                preferred_element_type=jnp.float32)
    y = y + b2_ref[...]

    # Skip connection: re-read x from VMEM (short live range, no spill of the
    # big input tile across the body) and cast once on the lane-dense store.
    # Padded rows of a partial tail tile compute garbage, but Pallas masks
    # their store, so it's harmless.
    o_ref[...] = (x_ref[...].astype(jnp.float32) + y).astype(o_ref.dtype)


def _tpu_hints():
    """Return (tensorcores_per_chip, default tokens per grid step)."""
    try:
        kind = jax.devices()[0].device_kind.lower()
    except Exception:
        kind = ""
    if "v7" in kind:
        return 2, 8192          # 2 TCs/chip, ~3.2 TB/s HBM -> bigger steps
    if "v4" in kind or "v5p" in kind:
        return 2, 4096          # megacore chips
    return 1, 4096              # v5e / v6e: single TensorCore


def _pick_pack(M, D):
    """Pack p consecutive tokens per row so the packed row width p*D is 128
    lanes (a free row-major reshape).  Falls back to p=1 when shapes don't
    allow it (still correct, just lane-masked)."""
    if D % 128 == 0 or 128 % D != 0:
        return 1
    p = 128 // D
    while p > 1 and M % p != 0:
        p //= 2
    return p


def _pick_row_tile(M4, target_rows, num_cores):
    """Rows of the packed [M4, p*D] view per grid step.
    Block rows must be a multiple of 8, or equal the full extent M4."""
    if num_cores >= 2 and M4 >= 16:
        # Always >= 2 roughly balanced, 8-aligned steps so both TensorCores
        # get work under dimension_semantics=("parallel",).
        half = -(-M4 // 2)
        half = -(-half // 8) * 8
        tr = min(target_rows, half)
    else:
        # Single TensorCore: never split small problems (pure step overhead).
        tr = min(target_rows, M4)
    if tr >= M4:
        return M4                       # single full-extent tile
    return max(8, (tr // 8) * 8)


def adapter_forward(x, w1, b1, w2, b2, *, tokens_per_tile=None):
    """x: [B, N, D]; w1: [D, H]; b1: [H]; w2: [H, D]; b2: [D]."""
    B, N, D = x.shape
    H = w1.shape[1]
    M = B * N

    num_cores, default_tokens = _tpu_hints()
    if tokens_per_tile is None:
        tokens_per_tile = default_tokens

    p = _pick_pack(M, D)
    M4 = M // p
    pD, pH = p * D, p * H

    # Free, row-major reshape: p consecutive tokens per 128-lane row.
    x2 = x.reshape(M4, pD)

    # Block-diagonal weights (p copies of W on the diagonal) and p-tiled,
    # pre-cast-to-f32 biases.  Tiny; VMEM-resident inside the kernel.
    w1_bd = jnp.kron(jnp.eye(p, dtype=w1.dtype), w1)        # [p*D, p*H]
    w2_bd = jnp.kron(jnp.eye(p, dtype=w2.dtype), w2)        # [p*H, p*D]
    b1_t = jnp.tile(b1.astype(jnp.float32), p).reshape(1, pH)
    b2_t = jnp.tile(b2.astype(jnp.float32), p).reshape(1, pD)

    tr = _pick_row_tile(M4, max(8, tokens_per_tile // p), num_cores)
    grid = (pl.cdiv(M4, tr),)

    itemsize = jnp.dtype(x.dtype).itemsize
    cost = pl.CostEstimate(
        flops=4 * M * D * H,                     # two matmuls
        transcendentals=M * H,                   # erf in the GELU
        bytes_accessed=2 * M * D * itemsize + 2 * pD * pH * itemsize,
    )

    # VMEM footprint: in+out double-buffered tiles at 8192 tokens f32 is
    # ~4 MiB -- well within the scoped default on v5e/v6e/v7x, so no
    # vmem_limit_bytes override is needed.
    out2 = pl.pallas_call(
        _adapter_kernel,
        out_shape=jax.ShapeDtypeStruct((M4, pD), x.dtype),
        grid_spec=pltpu.PrefetchScalarGridSpec(
            num_scalar_prefetch=0,
            grid=grid,
            in_specs=[
                pl.BlockSpec((tr, pD), lambda i: (i, 0)),   # packed x tile
                pl.BlockSpec((pD, pH), lambda i: (0, 0)),   # W1 block-diag (resident)
                pl.BlockSpec((1, pH), lambda i: (0, 0)),    # b1 (f32)
                pl.BlockSpec((pH, pD), lambda i: (0, 0)),   # W2 block-diag (resident)
                pl.BlockSpec((1, pD), lambda i: (0, 0)),    # b2 (f32)
            ],
            out_specs=pl.BlockSpec((tr, pD), lambda i: (i, 0)),
        ),
        compiler_params=pltpu.CompilerParams(
            dimension_semantics=("parallel",),
        ),
        cost_estimate=cost,
    )(x2, w1_bd, b1_t, w2_bd, b2_t)

    return out2.reshape(B, N, D)


def adapter_reference(x, w1, b1, w2, b2):
    h = jnp.einsum("bnd,dh->bnh", x, w1) + b1
    h = jax.nn.gelu(h, approximate=False)
    y = jnp.einsum("bnh,hd->bnd", h, w2) + b2
    return x + y


def _make_params(key, D, H, dtype=jnp.float32):
    k1, k2, k3, k4 = jax.random.split(key, 4)
    bound1 = 1.0 / math.sqrt(D)
    w1 = jax.random.uniform(k1, (D, H), dtype, -bound1, bound1)
    b1 = jax.random.uniform(k2, (H,), dtype, -bound1, bound1)
    bound2 = 1.0 / math.sqrt(H)
    w2 = jax.random.uniform(k3, (H, D), dtype, -bound2, bound2)
    b2 = jax.random.uniform(k4, (D,), dtype, -bound2, bound2)
    return w1, b1, w2, b2


if __name__ == "__main__":
    # Shapes consistent with the module: D_features=32, mlp_ratio=0.25 -> H=8.
    D = 32
    H = int(D * 0.25)

    key = jax.random.PRNGKey(0)
    kx1, kx2, kx3, kp = jax.random.split(key, 4)
    w1, b1, w2, b2 = _make_params(kp, D, H)

    fwd = jax.jit(adapter_forward)

    # Case 1: small problem (M=16 tokens -> 4 packed rows, single full tile).
    B, N = 2, 8
    x = jax.random.normal(kx1, (B, N, D), dtype=jnp.float32)
    out = jax.block_until_ready(fwd(x, w1, b1, w2, b2))
    ref = adapter_reference(x, w1, b1, w2, b2)
    assert out.shape == (B, N, D)
    assert jnp.allclose(out, ref, atol=1e-5, rtol=1e-5), "mismatch (small case)"

    # Case 2: larger token count -> packed 128-lane rows; on 2-TensorCore
    # chips this runs as >= 2 balanced parallel grid steps.
    B2, N2 = 4, 256
    x2 = jax.random.normal(kx2, (B2, N2, D), dtype=jnp.float32)
    out2 = jax.block_until_ready(fwd(x2, w1, b1, w2, b2))
    ref2 = adapter_reference(x2, w1, b1, w2, b2)
    assert out2.shape == (B2, N2, D)
    assert jnp.allclose(out2, ref2, atol=1e-5, rtol=1e-5), "mismatch (tiled case)"

    # Case 3: odd token count -> pack-factor fallback (p=1) and/or partial
    # tail tiles; masked stores keep it correct.
    B3, N3 = 3, 37
    x3 = jax.random.normal(kx3, (B3, N3, D), dtype=jnp.float32)
    out3 = jax.block_until_ready(fwd(x3, w1, b1, w2, b2))
    ref3 = adapter_reference(x3, w1, b1, w2, b2)
    assert out3.shape == (B3, N3, D)
    assert jnp.allclose(out3, ref3, atol=1e-5, rtol=1e-5), "mismatch (ragged case)"

    print("KERNEL_OK")
</pallas_src>

<mosaic_0001>
module attributes {stable_mosaic.version = 11 : i64} {
  func.func @_adapter_kernel(%arg0: i32, %arg1: memref<4x128xf32, #tpu.memory_space<vmem>>, %arg2: memref<128x32xf32, #tpu.memory_space<vmem>>, %arg3: memref<1x32xf32, #tpu.memory_space<vmem>>, %arg4: memref<32x128xf32, #tpu.memory_space<vmem>>, %arg5: memref<1x128xf32, #tpu.memory_space<vmem>>, %arg6: memref<4x128xf32, #tpu.memory_space<vmem>>) attributes {dimension_semantics = [#tpu.dimension_semantics<parallel>], iteration_bounds = array<i64: 1>, scalar_prefetch = 0 : i64, scratch_operands = 0 : i64, tpu.core_type = #tpu.core_type<tc>, window_params = [{transform_indices = @transform_0, window_bounds = array<i64: 4, 128>}, {pipeline_mode = #tpu.pipeline_mode<synchronous>, transform_indices = @transform_1, window_bounds = array<i64: 128, 32>}, {pipeline_mode = #tpu.pipeline_mode<synchronous>, transform_indices = @transform_2, window_bounds = array<i64: 1, 32>}, {pipeline_mode = #tpu.pipeline_mode<synchronous>, transform_indices = @transform_3, window_bounds = array<i64: 32, 128>}, {pipeline_mode = #tpu.pipeline_mode<synchronous>, transform_indices = @transform_4, window_bounds = array<i64: 1, 128>}, {transform_indices = @transform_5, window_bounds = array<i64: 4, 128>}]} {
    %c0 = arith.constant 0 : index
    %c0_0 = arith.constant 0 : index
    %0 = vector.load %arg1[%c0, %c0_0] : memref<4x128xf32, #tpu.memory_space<vmem>>, vector<4x128xf32>
    %c0_1 = arith.constant 0 : index
    %c0_2 = arith.constant 0 : index
    %1 = vector.load %arg2[%c0_1, %c0_2] : memref<128x32xf32, #tpu.memory_space<vmem>>, vector<128x32xf32>
    %cst = arith.constant dense<0.000000e+00> : vector<4x32xf32>
    %2 = tpu.matmul %0, %1, %cst {dimension_numbers = #tpu.dot_dimension_numbers<[1], [0], [0], [1], [0, 0, 1, 1], [], []>} : vector<4x128xf32>, vector<128x32xf32>, vector<4x32xf32> -> vector<4x32xf32>
    %c0_3 = arith.constant 0 : index
    %c0_4 = arith.constant 0 : index
    %3 = vector.load %arg3[%c0_3, %c0_4] : memref<1x32xf32, #tpu.memory_space<vmem>>, vector<1x32xf32>
    %4 = vector.broadcast %3 : vector<1x32xf32> to vector<4x32xf32>
    %5 = arith.addf %2, %4 : vector<4x32xf32>
    %cst_5 = arith.constant 5.000000e-01 : f32
    %6 = vector.broadcast %cst_5 : f32 to vector<4x32xf32>
    %7 = arith.mulf %6, %5 : vector<4x32xf32>
    %cst_6 = arith.constant 0.707106769 : f32
    %8 = vector.broadcast %cst_6 : f32 to vector<4x32xf32>
    %9 = arith.mulf %5, %8 : vector<4x32xf32>
    %10 = math.erf %9 : vector<4x32xf32>
    %cst_7 = arith.constant 1.000000e+00 : f32
    %11 = vector.broadcast %cst_7 : f32 to vector<4x32xf32>
    %12 = arith.addf %11, %10 : vector<4x32xf32>
    %13 = arith.mulf %7, %12 : vector<4x32xf32>
    %c0_8 = arith.constant 0 : index
    %c0_9 = arith.constant 0 : index
    %14 = vector.load %arg4[%c0_8, %c0_9] : memref<32x128xf32, #tpu.memory_space<vmem>>, vector<32x128xf32>
    %cst_10 = arith.constant dense<0.000000e+00> : vector<4x128xf32>
    %15 = tpu.matmul %13, %14, %cst_10 {dimension_numbers = #tpu.dot_dimension_numbers<[1], [0], [0], [1], [0, 0, 1, 1], [], []>} : vector<4x32xf32>, vector<32x128xf32>, vector<4x128xf32> -> vector<4x128xf32>
    %c0_11 = arith.constant 0 : index
    %c0_12 = arith.constant 0 : index
    %16 = vector.load %arg5[%c0_11, %c0_12] : memref<1x128xf32, #tpu.memory_space<vmem>>, vector<1x128xf32>
    %17 = vector.broadcast %16 : vector<1x128xf32> to vector<4x128xf32>
    %18 = arith.addf %15, %17 : vector<4x128xf32>
    %c0_13 = arith.constant 0 : index
    %c0_14 = arith.constant 0 : index
    %19 = vector.load %arg1[%c0_13, %c0_14] : memref<4x128xf32, #tpu.memory_space<vmem>>, vector<4x128xf32>
    %20 = arith.addf %19, %18 : vector<4x128xf32>
    %c0_15 = arith.constant 0 : index
    %c0_16 = arith.constant 0 : index
    %21 = vector.load %arg6[%c0_15, %c0_16] : memref<4x128xf32, #tpu.memory_space<vmem>>, vector<4x128xf32>
    tpu.vector_store %arg6[%c0_15, %c0_16], %20 {strides = array<i32>} : memref<4x128xf32, #tpu.memory_space<vmem>>, vector<4x128xf32>,
    return
  }
  func.func @transform_0(%arg0: i32) -> (i32, i32) {
    %c0_i32 = arith.constant 0 : i32
    %c0_i32_0 = arith.constant 0 : i32
    return %arg0, %c0_i32 : i32, i32
  }
  func.func @transform_1(%arg0: i32) -> (i32, i32) {
    %c0_i32 = arith.constant 0 : i32
    %c0_i32_0 = arith.constant 0 : i32
    %c0_i32_1 = arith.constant 0 : i32
    return %c0_i32, %c0_i32_0 : i32, i32
  }
  func.func @transform_2(%arg0: i32) -> (i32, i32) {
    %c0_i32 = arith.constant 0 : i32
    %c0_i32_0 = arith.constant 0 : i32
    %c0_i32_1 = arith.constant 0 : i32
    return %c0_i32, %c0_i32_0 : i32, i32
  }
  func.func @transform_3(%arg0: i32) -> (i32, i32) {
    %c0_i32 = arith.constant 0 : i32
    %c0_i32_0 = arith.constant 0 : i32
    %c0_i32_1 = arith.constant 0 : i32
    return %c0_i32, %c0_i32_0 : i32, i32
  }
  func.func @transform_4(%arg0: i32) -> (i32, i32) {
    %c0_i32 = arith.constant 0 : i32
    %c0_i32_0 = arith.constant 0 : i32
    %c0_i32_1 = arith.constant 0 : i32
    return %c0_i32, %c0_i32_0 : i32, i32
  }
  func.func @transform_5(%arg0: i32) -> (i32, i32) {
    %c0_i32 = arith.constant 0 : i32
    %c0_i32_0 = arith.constant 0 : i32
    return %arg0, %c0_i32 : i32, i32
  }
}

</mosaic_0001>

<llo_original>
// kernel: tile.13
$region0: #{tile.13}
  #allocation0 [shape = 's32[1]{0}', space=sflag, size = 0x4, scoped, tag = 'scoped memory for tile.13']
  %s0 = inlined_call_operand.vmem [shape: f32[8], index: 0, kind: input, shape index: {}]
  %s1 = inlined_call_operand.vmem [shape: f32[4,8], index: 1, kind: output, shape index: {}]
  // Predicated region
  $region2: #{tile.13} parent=0 // pred_check
    _
  $region3: #{tile.13} parent=0 // pred_check_branch
    %3 = sbr.rel (0) target = $region5
  $region4: #{tile.13} parent=0 // pred_region
    _
  $region5: #{tile.13} parent=0 // pred_fallthru
    _
  %v4 = vld [vmem:[%s0] ss:$0 sm:$0xff]
  %5 = vst [vmem:[%s1] sm:$0xf] %v4

// kernel: tile.14
$region0: #{tile.14}
  %s0 = inlined_call_operand.vmem [shape: f32[4,8], index: 0, kind: input, shape index: {}]
  %s1 = inlined_call_operand.vmem [shape: f32[1,32], index: 1, kind: output, shape index: {}]
  $region1: #{tile.14} parent=0
    #allocation0 [shape = 'u8[4096]{0}', space=vmem, size = 0x1000, scoped, tag = 'scoped mem for output reshape']
    #allocation1 [shape = 'u8[4096]{0}', space=vmem, size = 0x1000, scoped, tag = 'scoped mem for input reshape']
    %s3 = sshll.u32 1, 4
    %s4 = ssub.s32 %s3, 1
    %v5 = vld [vmem:[%s0] sm:%s4]
    %6 = vst [vmem:[#allocation1] sm:%s4] %v5
    %v7 = vld [vmem:[#allocation1] sm:$0x1]
    %vm8 = vcmask 64512
    %9 = vst.msk [vmem:[#allocation0] sm:$0x1] %vm8, %v7
    %s10 = scalar_lea.vmem [#allocation1], 3
    %v11 = vld [vmem:[%s10] sm:$0x1]
    %12 = vrot.lane.b32.xlu0 %v11, 24
    %v13 = vpop.permute.xlu0 %12
    %vm14 = vcmask 261312
    %15 = vst.msk [vmem:[#allocation0] sm:$0x1] %vm14, %v13
    %s16 = scalar_lea.vmem [#allocation1], 2
    %v17 = vld [vmem:[%s16] sm:$0x1]
    %18 = vrot.lane.b32.xlu0 %v17, 16
    %v19 = vpop.permute.xlu0 %18
    %vm20 = vcmask 195712
    %21 = vst.msk [vmem:[#allocation0] sm:$0x1] %vm20, %v19
    %s22 = scalar_lea.vmem [#allocation1], 1
    %v23 = vld [vmem:[%s22] sm:$0x1]
    %24 = vrot.lane.b32.xlu0 %v23, 8
    %v25 = vpop.permute.xlu0 %24
    %vm26 = vcmask 130112
    %27 = vst.msk [vmem:[#allocation0] sm:$0x1] %vm26, %v25
    %s29 = sshll.u32 1, 1
    %s30 = ssub.s32 %s29, 1
    %v32 = vld [vmem:[#allocation0] sm:%s30]
    %s33 = sshll.u32 1, 1
    %s34 = ssub.s32 %s33, 1
    %35 = vst [vmem:[%s1] sm:%s34] %v32

// kernel: tile.18
$region0: #{tile.18}
  #allocation0 [shape = 's32[1]{0}', space=sflag, size = 0x4, scoped, tag = 'scoped memory for tile.18']
  %s0 = inlined_call_operand.vmem [shape: f32[32], index: 0, kind: input, shape index: {}]
  %s1 = inlined_call_operand.vmem [shape: f32[4,32], index: 1, kind: output, shape index: {}]
  // Predicated region
  $region2: #{tile.18} parent=0 // pred_check
    _
  $region3: #{tile.18} parent=0 // pred_check_branch
    %3 = sbr.rel (0) target = $region5
  $region4: #{tile.18} parent=0 // pred_region
    _
  $region5: #{tile.18} parent=0 // pred_fallthru
    _
  %v4 = vld [vmem:[%s0] ss:$0 sm:$0xff]
  %5 = vst [vmem:[%s1] sm:$0xf] %v4

// kernel: tile.19
$region0: #{tile.19}
  %s0 = inlined_call_operand.vmem [shape: f32[4,32], index: 0, kind: input, shape index: {}]
  %s1 = inlined_call_operand.vmem [shape: f32[1,128], index: 1, kind: output, shape index: {}]
  $region1: #{tile.19} parent=0
    #allocation0 [shape = 'u8[4096]{0}', space=vmem, size = 0x1000, scoped, tag = 'scoped mem for output reshape']
    #allocation1 [shape = 'u8[4096]{0}', space=vmem, size = 0x1000, scoped, tag = 'scoped mem for input reshape']
    %s3 = sshll.u32 1, 4
    %s4 = ssub.s32 %s3, 1
    %v5 = vld [vmem:[%s0] sm:%s4]
    %6 = vst [vmem:[#allocation1] sm:%s4] %v5
    %v7 = vld [vmem:[#allocation1] sm:$0x1]
    %vm8 = vcmask 261120
    %9 = vst.msk [vmem:[#allocation0] sm:$0x1] %vm8, %v7
    %s10 = scalar_lea.vmem [#allocation1], 3
    %v11 = vld [vmem:[%s10] sm:$0x1]
    %12 = vrot.lane.b32.xlu0 %v11, 96
    %v13 = vpop.permute.xlu0 %12
    %vm14 = vcmask 1048320
    %15 = vst.msk [vmem:[#allocation0] sm:$0x1] %vm14, %v13
    %s16 = scalar_lea.vmem [#allocation1], 2
    %v17 = vld [vmem:[%s16] sm:$0x1]
    %18 = vrot.lane.b32.xlu0 %v17, 64
    %v19 = vpop.permute.xlu0 %18
    %vm20 = vcmask 785920
    %21 = vst.msk [vmem:[#allocation0] sm:$0x1] %vm20, %v19
    %s22 = scalar_lea.vmem [#allocation1], 1
    %v23 = vld [vmem:[%s22] sm:$0x1]
    %24 = vrot.lane.b32.xlu0 %v23, 32
    %v25 = vpop.permute.xlu0 %24
    %vm26 = vcmask 523520
    %27 = vst.msk [vmem:[#allocation0] sm:$0x1] %vm26, %v25
    %s29 = sshll.u32 1, 1
    %s30 = ssub.s32 %s29, 1
    %v32 = vld [vmem:[#allocation0] sm:%s30]
    %s33 = sshll.u32 1, 1
    %s34 = ssub.s32 %s33, 1
    %35 = vst [vmem:[%s1] sm:%s34] %v32

// kernel: adapter_forward.1
$region0: #{adapter_forward.1}
  #allocation0 [shape = 'u32[]', space=smem, size = 0x4, offset = 0x4, fixed_abs, tag = 'smem constant byte address 0x4 - core index']
  #allocation1 [shape = 'u32[144,128]{1,0:T(1,128)}', space=vmem, size = 0x12000, scoped, tag = 'internal scratch']
  %s0 = inlined_call_operand.vmem [shape: f32[4,128], index: 0, kind: input, shape index: {}]
  %s1 = inlined_call_operand.vmem [shape: f32[128,32], index: 1, kind: input, shape index: {}]
  %s2 = inlined_call_operand.vmem [shape: f32[1,32], index: 2, kind: input, shape index: {}]
  %s3 = inlined_call_operand.vmem [shape: f32[32,128], index: 3, kind: input, shape index: {}]
  %s4 = inlined_call_operand.vmem [shape: f32[1,128], index: 4, kind: input, shape index: {}]
  %s5 = inlined_call_operand.vmem [shape: f32[4,128], index: 5, kind: output, shape index: {}]
  %s6 = sld [smem:[#allocation0]]
  $region30: #{adapter_forward.1} parent=0
    _
  %s8 = ssub.s32 1, %s6
  %s9 = scalar_select 0, %s8, %s6
  // Predicated region
  $region2: #{adapter_forward.1} parent=0 // pred_check
    _
  $region3: #{adapter_forward.1} parent=0 // pred_check_branch
    %11 = sbr.rel (0) target = $region5
  $region4: #{adapter_forward.1} parent=0 // pred_region
    _
  $region5: #{adapter_forward.1} parent=0 // pred_fallthru
    _
  // Predicated region
  $region6: #{adapter_forward.1} parent=0 // pred_check
    _
  $region7: #{adapter_forward.1} parent=0 // pred_check_branch
    %13 = sbr.rel (0) target = $region9
  $region8: #{adapter_forward.1} parent=0 // pred_region
    _
  $region9: #{adapter_forward.1} parent=0 // pred_fallthru
    _
  // Predicated region
  $region10: #{adapter_forward.1} parent=0 // pred_check
    _
  $region11: #{adapter_forward.1} parent=0 // pred_check_branch
    %15 = sbr.rel (0) target = $region13
  $region12: #{adapter_forward.1} parent=0 // pred_region
    _
  $region13: #{adapter_forward.1} parent=0 // pred_fallthru
    _
  // Predicated region
  $region14: #{adapter_forward.1} parent=0 // pred_check
    _
  $region15: #{adapter_forward.1} parent=0 // pred_check_branch
    %17 = sbr.rel (0) target = $region17
  $region16: #{adapter_forward.1} parent=0 // pred_region
    _
  $region17: #{adapter_forward.1} parent=0 // pred_fallthru
    _
  // Predicated region
  $region18: #{adapter_forward.1} parent=0 // pred_check
    _
  $region19: #{adapter_forward.1} parent=0 // pred_check_branch
    %19 = sbr.rel (0) target = $region21
  $region20: #{adapter_forward.1} parent=0 // pred_region
    _
  $region21: #{adapter_forward.1} parent=0 // pred_fallthru
    _
  %v20 = vld [vmem:[%s0] sm:$0xf]
  %v21 = vld [vmem:[%s1] sm:$0xff]
  %v22 = vld [vmem:[%s1 + $0x8] sm:$0xff]
  %v23 = vld [vmem:[%s1 + $0x10] sm:$0xff]
  %v24 = vld [vmem:[%s1 + $0x18] sm:$0xff]
  %v25 = vld [vmem:[%s1 + $0x20] sm:$0xff]
  %v26 = vld [vmem:[%s1 + $0x28] sm:$0xff]
  %v27 = vld [vmem:[%s1 + $0x30] sm:$0xff]
  %v28 = vld [vmem:[%s1 + $0x38] sm:$0xff]
  %v29 = vld [vmem:[%s1 + $0x40] sm:$0xff]
  %v30 = vld [vmem:[%s1 + $0x48] sm:$0xff]
  %v31 = vld [vmem:[%s1 + $0x50] sm:$0xff]
  %v32 = vld [vmem:[%s1 + $0x58] sm:$0xff]
  %v33 = vld [vmem:[%s1 + $0x60] sm:$0xff]
  %v34 = vld [vmem:[%s1 + $0x68] sm:$0xff]
  %v35 = vld [vmem:[%s1 + $0x70] sm:$0xff]
  %v36 = vld [vmem:[%s1 + $0x78] sm:$0xff]
  %v37 = vld [vmem:[%s2] sm:$0x1]
  %v39 = vlaneseq
  %v40 = vshrl.u32 %v39, 7
  %v41 = vsub.s32 0, %v40
  %v42 = vrot.slane %v37, %v41
  %44 = vmatprep.subr.mxu0 0.0
  %45 = vmatpush1.msra.mxu0 %v36
  %46 = vmatprep.subr.mxu0 0.0
  %47 = vmatpush1.msra.mxu0 %v35
  %48 = vmatprep.subr.mxu0 0.0
  %49 = vmatpush1.msra.mxu0 %v34
  %50 = vmatprep.subr.mxu0 0.0
  %51 = vmatpush1.msra.mxu0 %v33
  %52 = vmatprep.subr.mxu0 0.0
  %53 = vmatpush1.msra.mxu0 %v32
  %54 = vmatprep.subr.mxu0 0.0
  %55 = vmatpush1.msra.mxu0 %v31
  %56 = vmatprep.subr.mxu0 0.0
  %57 = vmatpush1.msra.mxu0 %v30
  %58 = vmatprep.subr.mxu0 0.0
  %59 = vmatpush1.msra.mxu0 %v29
  %60 = vmatprep.subr.mxu0 0.0
  %61 = vmatpush1.msra.mxu0 %v28
  %62 = vmatprep.subr.mxu0 0.0
  %63 = vmatpush1.msra.mxu0 %v27
  %64 = vmatprep.subr.mxu0 0.0
  %65 = vmatpush1.msra.mxu0 %v26
  %66 = vmatprep.subr.mxu0 0.0
  %67 = vmatpush1.msra.mxu0 %v25
  %68 = vmatprep.subr.mxu0 0.0
  %69 = vmatpush1.msra.mxu0 %v24
  %70 = vmatprep.subr.mxu0 0.0
  %71 = vmatpush1.msra.mxu0 %v23
  %72 = vmatprep.subr.mxu0 0.0
  %73 = vmatpush1.msra.mxu0 %v22
  %74 = vmatprep.subr.mxu0 0.0
  %75 = vmatpush1.msra.mxu0 %v21
  %76 = vmatprep.subr.mxu0 0.0
  %77 = vmatpush2.msra.mxu0 0.0
  %78 = vmatprep.subr.mxu0 0.0
  %79 = vmatpush2.msra.mxu0 0.0
  %80 = vmatprep.subr.mxu0 0.0
  %81 = vmatpush2.msra.mxu0 0.0
  %82 = vmatprep.subr.mxu0 0.0
  %83 = vmatpush2.msra.mxu0 0.0
  %84 = vmatprep.subr.mxu0 0.0
  %85 = vmatpush2.msra.mxu0 0.0
  %86 = vmatprep.subr.mxu0 0.0
  %87 = vmatpush2.msra.mxu0 0.0
  %88 = vmatprep.subr.mxu0 0.0
  %89 = vmatpush2.msra.mxu0 0.0
  %90 = vmatprep.subr.mxu0 0.0
  %91 = vmatpush2.msra.mxu0 0.0
  %92 = vmatprep.subr.mxu0 0.0
  %93 = vmatpush2.msra.mxu0 0.0
  %94 = vmatprep.subr.mxu0 0.0
  %95 = vmatpush2.msra.mxu0 0.0
  %96 = vmatprep.subr.mxu0 0.0
  %97 = vmatpush2.msra.mxu0 0.0
  %98 = vmatprep.subr.mxu0 0.0
  %99 = vmatpush2.msra.mxu0 0.0
  %100 = vmatprep.subr.mxu0 0.0
  %101 = vmatpush2.msra.mxu0 0.0
  %102 = vmatprep.subr.mxu0 0.0
  %103 = vmatpush2.msra.mxu0 0.0
  %104 = vmatprep.subr.mxu0 0.0
  %105 = vmatpush2.msra.mxu0 0.0
  %106 = vmatprep.subr.mxu0 0.0
  %107 = vmatpush2.msra.mxu0 0.0
  %108 = vmatprep.mubr.f32.mxu0 0.0
  %109 = vmatmul.mubr.f32.gmra.mxu0 %v20
  %v110 = vpop.f32.mrf.mxu0
  %v111 = vadd.f32 %v42, %v110
  %v112 = vpop.f32.mrf.mxu0
  %113 = vdwg.mxu0
  %v114 = vmul.f32 %v111, 0.5
  %v115 = vmul.f32 %v111, 0.70710677
  %v116 = verf.f32.pop %v115
  %v117 = vadd.f32 %v116, 1.0
  %v118 = vmul.f32 %v114, %v117
  %v119 = vld [vmem:[%s3] sm:$0xff]
  %v120 = vld [vmem:[%s3 + $0x8] sm:$0xff]
  %v121 = vld [vmem:[%s3 + $0x10] sm:$0xff]
  %v122 = vld [vmem:[%s3 + $0x18] sm:$0xff]
  %v123 = vld [vmem:[%s4] sm:$0x1]
  %v125 = vlaneseq
  %v126 = vshrl.u32 %v125, 7
  %v127 = vsub.s32 0, %v126
  %v128 = vrot.slane %v123, %v127
  %vm130 = vcmask 261120
  %v132 = vsel %vm130, %v118, 0
  %134 = vmatprep.subr.mxu0 0.0
  %135 = vmatpush1.msra.mxu0 0.0
  %136 = vmatprep.subr.mxu0 0.0
  %137 = vmatpush1.msra.mxu0 0.0
  %138 = vmatprep.subr.mxu0 0.0
  %139 = vmatpush1.msra.mxu0 0.0
  %140 = vmatprep.subr.mxu0 0.0
  %141 = vmatpush1.msra.mxu0 0.0
  %142 = vmatprep.subr.mxu0 0.0
  %143 = vmatpush1.msra.mxu0 0.0
  %144 = vmatprep.subr.mxu0 0.0
  %145 = vmatpush1.msra.mxu0 0.0
  %146 = vmatprep.subr.mxu0 0.0
  %147 = vmatpush1.msra.mxu0 0.0
  %148 = vmatprep.subr.mxu0 0.0
  %149 = vmatpush1.msra.mxu0 0.0
  %150 = vmatprep.subr.mxu0 0.0
  %151 = vmatpush1.msra.mxu0 0.0
  %152 = vmatprep.subr.mxu0 0.0
  %153 = vmatpush1.msra.mxu0 0.0
  %154 = vmatprep.subr.mxu0 0.0
  %155 = vmatpush1.msra.mxu0 0.0
  %156 = vmatprep.subr.mxu0 0.0
  %157 = vmatpush1.msra.mxu0 0.0
  %158 = vmatprep.subr.mxu0 0.0
  %159 = vmatpush1.msra.mxu0 %v122
  %160 = vmatprep.subr.mxu0 0.0
  %161 = vmatpush1.msra.mxu0 %v121
  %162 = vmatprep.subr.mxu0 0.0
  %163 = vmatpush1.msra.mxu0 %v120
  %164 = vmatprep.subr.mxu0 0.0
  %165 = vmatpush1.msra.mxu0 %v119
  %166 = vmatprep.subr.mxu0 0.0
  %167 = vmatpush2.msra.mxu0 0.0
  %168 = vmatprep.subr.mxu0 0.0
  %169 = vmatpush2.msra.mxu0 0.0
  %170 = vmatprep.subr.mxu0 0.0
  %171 = vmatpush2.msra.mxu0 0.0
  %172 = vmatprep.subr.mxu0 0.0
  %173 = vmatpush2.msra.mxu0 0.0
  %174 = vmatprep.subr.mxu0 0.0
  %175 = vmatpush2.msra.mxu0 0.0
  %176 = vmatprep.subr.mxu0 0.0
  %177 = vmatpush2.msra.mxu0 0.0
  %178 = vmatprep.subr.mxu0 0.0
  %179 = vmatpush2.msra.mxu0 0.0
  %180 = vmatprep.subr.mxu0 0.0
  %181 = vmatpush2.msra.mxu0 0.0
  %182 = vmatprep.subr.mxu0 0.0
  %183 = vmatpush2.msra.mxu0 0.0
  %184 = vmatprep.subr.mxu0 0.0
  %185 = vmatpush2.msra.mxu0 0.0
  %186 = vmatprep.subr.mxu0 0.0
  %187 = vmatpush2.msra.mxu0 0.0
  %188 = vmatprep.subr.mxu0 0.0
  %189 = vmatpush2.msra.mxu0 0.0
  %190 = vmatprep.subr.mxu0 0.0
  %191 = vmatpush2.msra.mxu0 0.0
  %192 = vmatprep.subr.mxu0 0.0
  %193 = vmatpush2.msra.mxu0 0.0
  %194 = vmatprep.subr.mxu0 0.0
  %195 = vmatpush2.msra.mxu0 0.0
  %196 = vmatprep.subr.mxu0 0.0
  %197 = vmatpush2.msra.mxu0 0.0
  %198 = vmatprep.mubr.f32.mxu0 0.0
  %199 = vmatmul.mubr.f32.gmra.mxu0 %v132
  %v200 = vpop.f32.mrf.mxu0
  %v201 = vadd.f32 %v128, %v200
  %v202 = vpop.f32.mrf.mxu0
  %203 = vdwg.mxu0
  %v204 = vadd.f32 %v20, %v201
  %205 = vst [vmem:[%s5] sm:$0xf] %v204
  // Predicated region
  $region22: #{adapter_forward.1} parent=0 // pred_check
    _
  $region23: #{adapter_forward.1} parent=0 // pred_check_branch
    %207 = sbr.rel (0) target = $region25
  $region24: #{adapter_forward.1} parent=0 // pred_region
    _
  $region25: #{adapter_forward.1} parent=0 // pred_fallthru
    _
  // Predicated region
  $region26: #{adapter_forward.1} parent=0 // pred_check
    _
  $region27: #{adapter_forward.1} parent=0 // pred_check_branch
    %209 = sbr.rel (0) target = $region29
  $region28: #{adapter_forward.1} parent=0 // pred_region
    _
  $region29: #{adapter_forward.1} parent=0 // pred_fallthru
    _

</llo_original>
